<compile_context>
chip_gen: v6e
topology: v6e:2x2x1
jax: 0.10.0
libtpu: 0.0.40
codegen_flags: <defaults>
</compile_context>

<pallas_src>
import math

import jax
import jax.numpy as jnp
from jax.experimental import pallas as pl
from jax.experimental.pallas import tpu as pltpu

HIDDEN_SIZE = 24
INPUT_SIZE = 8
NUM_CLASSES = 10  # fc is hard-coded to 10 outputs in the reference module


def gru_fc_kernel(x_ref,        # (S, Bt, I)   time-major input tile (bf16)
                  w_zr_t_ref,   # (H, 2H) bf16 = [w_z.T | w_r.T]
                  p_zr_t_ref,   # (I, 2H) bf16 = [p_z.T | p_r.T]
                  b_zr_ref,     # (1, 2H) f32  = [b_z   | b_r]
                  fc_w_t_ref,   # (H, 10) bf16 = fc.weight.T
                  fc_b_ref,     # (1, 10) f32
                  out_ref):     # (Bt, 10) f32
    seq_len, bt, _ = x_ref.shape               # static
    hidden = w_zr_t_ref.shape[0]                # H

    # Hoist all weight / bias loads out of the recurrence.
    w_zr = w_zr_t_ref[...]
    p_zr = p_zr_t_ref[...]
    b_zr = b_zr_ref[...]

    # Recurrence: h carried in vregs (f32), loop fully unrolled (S is static).
    h = jnp.zeros((bt, hidden), jnp.float32)
    for t in range(seq_len):
        x_t = x_ref[t]                                              # (Bt, I) contiguous vld
        # Per-step input projection; independent of h, so it sits OFF the serial chain and
        # the scheduler can overlap it with the previous step's sigmoid / update.
        xp_t = jnp.dot(x_t, p_zr, preferred_element_type=jnp.float32) + b_zr
        pre = jnp.dot(h.astype(jnp.bfloat16), w_zr,
                      preferred_element_type=jnp.float32) + xp_t    # (Bt, 2H)
        gates = jax.nn.sigmoid(pre)                                 # f32 sigmoid
        z = gates[:, :hidden]
        cand = gates[:, hidden:]
        h = h + z * (cand - h)                                      # == (1-z)*h + z*cand

    # Final Linear(H, 10); tiny (Bt, 10) masked store.
    out_ref[...] = (jnp.dot(h.astype(jnp.bfloat16), fc_w_t_ref[...],
                            preferred_element_type=jnp.float32) + fc_b_ref[...])


def _round_up(v, m):
    return ((v + m - 1) // m) * m


def rnn_forward(x, params, *, block_b=None):
    """x: (B, S, I) float32  ->  (B, 10) float32."""
    B, S, I = x.shape
    H = params["w_r"].shape[0]
    G = 2 * H

    if block_b is None:
        if B <= 8:
            block_b = B                        # tiny batch: single full-dim block
        else:
            # >= 2 grid steps (v7x megacore sharding of the "parallel" axis),
            # <= 128 rows (no vreg spills in the unrolled time loop), multiple of 8.
            block_b = min(128, _round_up(pl.cdiv(B, 2), 8))
    num_b = pl.cdiv(B, block_b)

    # Layout prep (one tiny HBM pass, no extra work inside the recurrence):
    #   * time-major x  -> per-step slab reads in the kernel are unit-stride
    #   * bf16 matmul operands (MXU-native); biases / accumulators stay f32
    #   * gate weights fused along the output dim -> one (Bt,H)@(H,2H) matmul per step
    x_tm = jnp.transpose(x, (1, 0, 2)).astype(jnp.bfloat16)                     # (S, B, I)
    w_zr_t = jnp.concatenate([params["w_z"].T, params["w_r"].T],
                             axis=1).astype(jnp.bfloat16)                       # (H, 2H)
    p_zr_t = jnp.concatenate([params["p_z"].T, params["p_r"].T],
                             axis=1).astype(jnp.bfloat16)                       # (I, 2H)
    b_zr = jnp.concatenate([params["b_z"].reshape(1, H),
                            params["b_r"].reshape(1, H)], axis=1)               # (1, 2H) f32
    fc_w_t = params["fc_w"].T.astype(jnp.bfloat16)                              # (H, 10)
    fc_b = params["fc_b"].reshape(1, NUM_CLASSES)                               # (1, 10) f32

    const = lambda b: (0, 0)   # weights/biases: same whole-array block every grid step
    return pl.pallas_call(
        gru_fc_kernel,
        out_shape=jax.ShapeDtypeStruct((B, NUM_CLASSES), jnp.float32),
        grid=(num_b,),
        in_specs=[
            pl.BlockSpec((S, block_b, I), lambda b: (0, b, 0)),   # time-major x tile
            pl.BlockSpec((H, G), const),
            pl.BlockSpec((I, G), const),
            pl.BlockSpec((1, G), const),
            pl.BlockSpec((H, NUM_CLASSES), const),
            pl.BlockSpec((1, NUM_CLASSES), const),
        ],
        out_specs=pl.BlockSpec((block_b, NUM_CLASSES), lambda b: (b, 0)),
        compiler_params=pltpu.CompilerParams(
            dimension_semantics=("parallel",)),
    )(x_tm, w_zr_t, p_zr_t, b_zr, fc_w_t, fc_b)


def init_params(key, input_size, hidden_size):
    """Deterministic init matching the PyTorch module's shapes/distributions."""
    ks = jax.random.split(key, 8)
    bound = 1.0 / math.sqrt(hidden_size)

    def u(k, shape, b):
        return jax.random.uniform(k, shape, jnp.float32, minval=-b, maxval=b)

    fc_bound = 1.0 / math.sqrt(hidden_size)  # PyTorch Linear default init bound
    return {
        "w_r": u(ks[0], (hidden_size, hidden_size), bound),
        "p_r": u(ks[1], (hidden_size, input_size), bound),
        "b_r": u(ks[2], (hidden_size, 1), bound),
        "w_z": u(ks[3], (hidden_size, hidden_size), bound),
        "p_z": u(ks[4], (hidden_size, input_size), bound),
        "b_z": u(ks[5], (hidden_size, 1), bound),
        "fc_w": u(ks[6], (NUM_CLASSES, hidden_size), fc_bound),
        "fc_b": u(ks[7], (NUM_CLASSES,), fc_bound),
    }


def rnn_forward_reference(x, params):
    """Pure-JAX f32 reference mirroring the PyTorch forward, for validation."""
    B, S, _ = x.shape
    H = params["w_r"].shape[0]
    h = jnp.zeros((B, H), jnp.float32)
    for t in range(S):
        x_t = x[:, t, :]
        z = jax.nn.sigmoid(h @ params["w_z"].T + x_t @ params["p_z"].T
                           + params["b_z"].reshape(1, H))
        cand = jax.nn.sigmoid(h @ params["w_r"].T + x_t @ params["p_r"].T
                              + params["b_r"].reshape(1, H))
        h = (1.0 - z) * h + z * cand
    return h @ params["fc_w"].T + params["fc_b"]


if __name__ == "__main__":
    key = jax.random.PRNGKey(0)
    k_x, k_p, k_x2 = jax.random.split(key, 3)

    params = init_params(k_p, INPUT_SIZE, HIDDEN_SIZE)

    # Small single-tile case (matches the module's expected usage).
    B, S = 2, 8
    x = jax.random.normal(k_x, (B, S, INPUT_SIZE), jnp.float32)
    out = jax.block_until_ready(rnn_forward(x, params))
    ref = rnn_forward_reference(x, params)
    assert out.shape == (B, NUM_CLASSES)
    # bf16 matmul operands (f32 accumulation) -> tolerance loosened vs. the pure-f32 reference.
    assert jnp.allclose(out, ref, atol=5e-2, rtol=5e-2), (out, ref)

    # Multi-tile case: >= 2 grid steps and a partial last batch block.
    B2 = 20
    x2 = jax.random.normal(k_x2, (B2, S, INPUT_SIZE), jnp.float32)
    out2 = jax.block_until_ready(rnn_forward(x2, params))
    ref2 = rnn_forward_reference(x2, params)
    assert out2.shape == (B2, NUM_CLASSES)
    assert jnp.allclose(out2, ref2, atol=5e-2, rtol=5e-2), (out2, ref2)

    print("KERNEL_OK")
</pallas_src>

<mosaic_0001>
module attributes {stable_mosaic.version = 11 : i64} {
  func.func @gru_fc_kernel(%arg0: i32, %arg1: memref<8x2x8xbf16, #tpu.memory_space<vmem>>, %arg2: memref<24x48xbf16, #tpu.memory_space<vmem>>, %arg3: memref<8x48xbf16, #tpu.memory_space<vmem>>, %arg4: memref<1x48xf32, #tpu.memory_space<vmem>>, %arg5: memref<24x10xbf16, #tpu.memory_space<vmem>>, %arg6: memref<1x10xf32, #tpu.memory_space<vmem>>, %arg7: memref<2x10xf32, #tpu.memory_space<vmem>>) attributes {dimension_semantics = [#tpu.dimension_semantics<parallel>], iteration_bounds = array<i64: 1>, scalar_prefetch = 0 : i64, scratch_operands = 0 : i64, tpu.core_type = #tpu.core_type<tc>, window_params = [{transform_indices = @transform_0, window_bounds = array<i64: 8, 2, 8>}, {pipeline_mode = #tpu.pipeline_mode<synchronous>, transform_indices = @transform_1, window_bounds = array<i64: 24, 48>}, {pipeline_mode = #tpu.pipeline_mode<synchronous>, transform_indices = @transform_2, window_bounds = array<i64: 8, 48>}, {pipeline_mode = #tpu.pipeline_mode<synchronous>, transform_indices = @transform_3, window_bounds = array<i64: 1, 48>}, {pipeline_mode = #tpu.pipeline_mode<synchronous>, transform_indices = @transform_4, window_bounds = array<i64: 24, 10>}, {pipeline_mode = #tpu.pipeline_mode<synchronous>, transform_indices = @transform_5, window_bounds = array<i64: 1, 10>}, {transform_indices = @transform_6, window_bounds = array<i64: 2, 10>}]} {
    %c0 = arith.constant 0 : index
    %c0_0 = arith.constant 0 : index
    %0 = vector.load %arg2[%c0, %c0_0] : memref<24x48xbf16, #tpu.memory_space<vmem>>, vector<24x48xbf16>
    %c0_1 = arith.constant 0 : index
    %c0_2 = arith.constant 0 : index
    %1 = vector.load %arg3[%c0_1, %c0_2] : memref<8x48xbf16, #tpu.memory_space<vmem>>, vector<8x48xbf16>
    %c0_3 = arith.constant 0 : index
    %c0_4 = arith.constant 0 : index
    %2 = vector.load %arg4[%c0_3, %c0_4] : memref<1x48xf32, #tpu.memory_space<vmem>>, vector<1x48xf32>
    %cst = arith.constant 0.000000e+00 : f32
    %3 = vector.broadcast %cst : f32 to vector<2x24xf32>
    %c0_5 = arith.constant 0 : index
    %c0_6 = arith.constant 0 : index
    %c0_7 = arith.constant 0 : index
    %4 = vector.load %arg1[%c0_5, %c0_6, %c0_7] : memref<8x2x8xbf16, #tpu.memory_space<vmem>>, vector<1x2x8xbf16>
    %5 = vector.shape_cast %4 : vector<1x2x8xbf16> to vector<2x8xbf16>
    %cst_8 = arith.constant dense<0.000000e+00> : vector<2x48xf32>
    %6 = tpu.matmul %5, %1, %cst_8 {dimension_numbers = #tpu.dot_dimension_numbers<[1], [0], [0], [1], [0, 0, 1, 1], [], []>} : vector<2x8xbf16>, vector<8x48xbf16>, vector<2x48xf32> -> vector<2x48xf32>
    %7 = vector.broadcast %2 : vector<1x48xf32> to vector<2x48xf32>
    %8 = arith.addf %6, %7 : vector<2x48xf32>
    %9 = arith.truncf %3 : vector<2x24xf32> to vector<2x24xbf16>
    %cst_9 = arith.constant dense<0.000000e+00> : vector<2x48xf32>
    %10 = tpu.matmul %9, %0, %cst_9 {dimension_numbers = #tpu.dot_dimension_numbers<[1], [0], [0], [1], [0, 0, 1, 1], [], []>} : vector<2x24xbf16>, vector<24x48xbf16>, vector<2x48xf32> -> vector<2x48xf32>
    %11 = arith.addf %10, %8 : vector<2x48xf32>
    %12 = arith.negf %11 : vector<2x48xf32>
    %13 = math.exp %12 : vector<2x48xf32>
    %cst_10 = arith.constant 1.000000e+00 : f32
    %14 = vector.broadcast %cst_10 : f32 to vector<2x48xf32>
    %15 = arith.addf %14, %13 : vector<2x48xf32>
    %16 = arith.divf %14, %15 : vector<2x48xf32>
    %17 = vector.extract_strided_slice %16 {offsets = [0, 0], sizes = [2, 24], strides = [1, 1]} : vector<2x48xf32> to vector<2x24xf32>
    %18 = vector.extract_strided_slice %16 {offsets = [0, 24], sizes = [2, 24], strides = [1, 1]} : vector<2x48xf32> to vector<2x24xf32>
    %19 = arith.subf %18, %3 : vector<2x24xf32>
    %20 = arith.mulf %17, %19 : vector<2x24xf32>
    %21 = arith.addf %3, %20 : vector<2x24xf32>
    %c1 = arith.constant 1 : index
    %c0_11 = arith.constant 0 : index
    %c0_12 = arith.constant 0 : index
    %22 = vector.load %arg1[%c1, %c0_11, %c0_12] : memref<8x2x8xbf16, #tpu.memory_space<vmem>>, vector<1x2x8xbf16>
    %23 = vector.shape_cast %22 : vector<1x2x8xbf16> to vector<2x8xbf16>
    %cst_13 = arith.constant dense<0.000000e+00> : vector<2x48xf32>
    %24 = tpu.matmul %23, %1, %cst_13 {dimension_numbers = #tpu.dot_dimension_numbers<[1], [0], [0], [1], [0, 0, 1, 1], [], []>} : vector<2x8xbf16>, vector<8x48xbf16>, vector<2x48xf32> -> vector<2x48xf32>
    %25 = vector.broadcast %2 : vector<1x48xf32> to vector<2x48xf32>
    %26 = arith.addf %24, %25 : vector<2x48xf32>
    %27 = arith.truncf %21 : vector<2x24xf32> to vector<2x24xbf16>
    %cst_14 = arith.constant dense<0.000000e+00> : vector<2x48xf32>
    %28 = tpu.matmul %27, %0, %cst_14 {dimension_numbers = #tpu.dot_dimension_numbers<[1], [0], [0], [1], [0, 0, 1, 1], [], []>} : vector<2x24xbf16>, vector<24x48xbf16>, vector<2x48xf32> -> vector<2x48xf32>
    %29 = arith.addf %28, %26 : vector<2x48xf32>
    %30 = arith.negf %29 : vector<2x48xf32>
    %31 = math.exp %30 : vector<2x48xf32>
    %cst_15 = arith.constant 1.000000e+00 : f32
    %32 = vector.broadcast %cst_15 : f32 to vector<2x48xf32>
    %33 = arith.addf %32, %31 : vector<2x48xf32>
    %34 = arith.divf %32, %33 : vector<2x48xf32>
    %35 = vector.extract_strided_slice %34 {offsets = [0, 0], sizes = [2, 24], strides = [1, 1]} : vector<2x48xf32> to vector<2x24xf32>
    %36 = vector.extract_strided_slice %34 {offsets = [0, 24], sizes = [2, 24], strides = [1, 1]} : vector<2x48xf32> to vector<2x24xf32>
    %37 = arith.subf %36, %21 : vector<2x24xf32>
    %38 = arith.mulf %35, %37 : vector<2x24xf32>
    %39 = arith.addf %21, %38 : vector<2x24xf32>
    %c2 = arith.constant 2 : index
    %c0_16 = arith.constant 0 : index
    %c0_17 = arith.constant 0 : index
    %40 = vector.load %arg1[%c2, %c0_16, %c0_17] : memref<8x2x8xbf16, #tpu.memory_space<vmem>>, vector<1x2x8xbf16>
    %41 = vector.shape_cast %40 : vector<1x2x8xbf16> to vector<2x8xbf16>
    %cst_18 = arith.constant dense<0.000000e+00> : vector<2x48xf32>
    %42 = tpu.matmul %41, %1, %cst_18 {dimension_numbers = #tpu.dot_dimension_numbers<[1], [0], [0], [1], [0, 0, 1, 1], [], []>} : vector<2x8xbf16>, vector<8x48xbf16>, vector<2x48xf32> -> vector<2x48xf32>
    %43 = vector.broadcast %2 : vector<1x48xf32> to vector<2x48xf32>
    %44 = arith.addf %42, %43 : vector<2x48xf32>
    %45 = arith.truncf %39 : vector<2x24xf32> to vector<2x24xbf16>
    %cst_19 = arith.constant dense<0.000000e+00> : vector<2x48xf32>
    %46 = tpu.matmul %45, %0, %cst_19 {dimension_numbers = #tpu.dot_dimension_numbers<[1], [0], [0], [1], [0, 0, 1, 1], [], []>} : vector<2x24xbf16>, vector<24x48xbf16>, vector<2x48xf32> -> vector<2x48xf32>
    %47 = arith.addf %46, %44 : vector<2x48xf32>
    %48 = arith.negf %47 : vector<2x48xf32>
    %49 = math.exp %48 : vector<2x48xf32>
    %cst_20 = arith.constant 1.000000e+00 : f32
    %50 = vector.broadcast %cst_20 : f32 to vector<2x48xf32>
    %51 = arith.addf %50, %49 : vector<2x48xf32>
    %52 = arith.divf %50, %51 : vector<2x48xf32>
    %53 = vector.extract_strided_slice %52 {offsets = [0, 0], sizes = [2, 24], strides = [1, 1]} : vector<2x48xf32> to vector<2x24xf32>
    %54 = vector.extract_strided_slice %52 {offsets = [0, 24], sizes = [2, 24], strides = [1, 1]} : vector<2x48xf32> to vector<2x24xf32>
    %55 = arith.subf %54, %39 : vector<2x24xf32>
    %56 = arith.mulf %53, %55 : vector<2x24xf32>
    %57 = arith.addf %39, %56 : vector<2x24xf32>
    %c3 = arith.constant 3 : index
    %c0_21 = arith.constant 0 : index
    %c0_22 = arith.constant 0 : index
    %58 = vector.load %arg1[%c3, %c0_21, %c0_22] : memref<8x2x8xbf16, #tpu.memory_space<vmem>>, vector<1x2x8xbf16>
    %59 = vector.shape_cast %58 : vector<1x2x8xbf16> to vector<2x8xbf16>
    %cst_23 = arith.constant dense<0.000000e+00> : vector<2x48xf32>
    %60 = tpu.matmul %59, %1, %cst_23 {dimension_numbers = #tpu.dot_dimension_numbers<[1], [0], [0], [1], [0, 0, 1, 1], [], []>} : vector<2x8xbf16>, vector<8x48xbf16>, vector<2x48xf32> -> vector<2x48xf32>
    %61 = vector.broadcast %2 : vector<1x48xf32> to vector<2x48xf32>
    %62 = arith.addf %60, %61 : vector<2x48xf32>
    %63 = arith.truncf %57 : vector<2x24xf32> to vector<2x24xbf16>
    %cst_24 = arith.constant dense<0.000000e+00> : vector<2x48xf32>
    %64 = tpu.matmul %63, %0, %cst_24 {dimension_numbers = #tpu.dot_dimension_numbers<[1], [0], [0], [1], [0, 0, 1, 1], [], []>} : vector<2x24xbf16>, vector<24x48xbf16>, vector<2x48xf32> -> vector<2x48xf32>
    %65 = arith.addf %64, %62 : vector<2x48xf32>
    %66 = arith.negf %65 : vector<2x48xf32>
    %67 = math.exp %66 : vector<2x48xf32>
    %cst_25 = arith.constant 1.000000e+00 : f32
    %68 = vector.broadcast %cst_25 : f32 to vector<2x48xf32>
    %69 = arith.addf %68, %67 : vector<2x48xf32>
    %70 = arith.divf %68, %69 : vector<2x48xf32>
    %71 = vector.extract_strided_slice %70 {offsets = [0, 0], sizes = [2, 24], strides = [1, 1]} : vector<2x48xf32> to vector<2x24xf32>
    %72 = vector.extract_strided_slice %70 {offsets = [0, 24], sizes = [2, 24], strides = [1, 1]} : vector<2x48xf32> to vector<2x24xf32>
    %73 = arith.subf %72, %57 : vector<2x24xf32>
    %74 = arith.mulf %71, %73 : vector<2x24xf32>
    %75 = arith.addf %57, %74 : vector<2x24xf32>
    %c4 = arith.constant 4 : index
    %c0_26 = arith.constant 0 : index
    %c0_27 = arith.constant 0 : index
    %76 = vector.load %arg1[%c4, %c0_26, %c0_27] : memref<8x2x8xbf16, #tpu.memory_space<vmem>>, vector<1x2x8xbf16>
    %77 = vector.shape_cast %76 : vector<1x2x8xbf16> to vector<2x8xbf16>
    %cst_28 = arith.constant dense<0.000000e+00> : vector<2x48xf32>
    %78 = tpu.matmul %77, %1, %cst_28 {dimension_numbers = #tpu.dot_dimension_numbers<[1], [0], [0], [1], [0, 0, 1, 1], [], []>} : vector<2x8xbf16>, vector<8x48xbf16>, vector<2x48xf32> -> vector<2x48xf32>
    %79 = vector.broadcast %2 : vector<1x48xf32> to vector<2x48xf32>
    %80 = arith.addf %78, %79 : vector<2x48xf32>
    %81 = arith.truncf %75 : vector<2x24xf32> to vector<2x24xbf16>
    %cst_29 = arith.constant dense<0.000000e+00> : vector<2x48xf32>
    %82 = tpu.matmul %81, %0, %cst_29 {dimension_numbers = #tpu.dot_dimension_numbers<[1], [0], [0], [1], [0, 0, 1, 1], [], []>} : vector<2x24xbf16>, vector<24x48xbf16>, vector<2x48xf32> -> vector<2x48xf32>
    %83 = arith.addf %82, %80 : vector<2x48xf32>
    %84 = arith.negf %83 : vector<2x48xf32>
    %85 = math.exp %84 : vector<2x48xf32>
    %cst_30 = arith.constant 1.000000e+00 : f32
    %86 = vector.broadcast %cst_30 : f32 to vector<2x48xf32>
    %87 = arith.addf %86, %85 : vector<2x48xf32>
    %88 = arith.divf %86, %87 : vector<2x48xf32>
    %89 = vector.extract_strided_slice %88 {offsets = [0, 0], sizes = [2, 24], strides = [1, 1]} : vector<2x48xf32> to vector<2x24xf32>
    %90 = vector.extract_strided_slice %88 {offsets = [0, 24], sizes = [2, 24], strides = [1, 1]} : vector<2x48xf32> to vector<2x24xf32>
    %91 = arith.subf %90, %75 : vector<2x24xf32>
    %92 = arith.mulf %89, %91 : vector<2x24xf32>
    %93 = arith.addf %75, %92 : vector<2x24xf32>
    %c5 = arith.constant 5 : index
    %c0_31 = arith.constant 0 : index
    %c0_32 = arith.constant 0 : index
    %94 = vector.load %arg1[%c5, %c0_31, %c0_32] : memref<8x2x8xbf16, #tpu.memory_space<vmem>>, vector<1x2x8xbf16>
    %95 = vector.shape_cast %94 : vector<1x2x8xbf16> to vector<2x8xbf16>
    %cst_33 = arith.constant dense<0.000000e+00> : vector<2x48xf32>
    %96 = tpu.matmul %95, %1, %cst_33 {dimension_numbers = #tpu.dot_dimension_numbers<[1], [0], [0], [1], [0, 0, 1, 1], [], []>} : vector<2x8xbf16>, vector<8x48xbf16>, vector<2x48xf32> -> vector<2x48xf32>
    %97 = vector.broadcast %2 : vector<1x48xf32> to vector<2x48xf32>
    %98 = arith.addf %96, %97 : vector<2x48xf32>
    %99 = arith.truncf %93 : vector<2x24xf32> to vector<2x24xbf16>
    %cst_34 = arith.constant dense<0.000000e+00> : vector<2x48xf32>
    %100 = tpu.matmul %99, %0, %cst_34 {dimension_numbers = #tpu.dot_dimension_numbers<[1], [0], [0], [1], [0, 0, 1, 1], [], []>} : vector<2x24xbf16>, vector<24x48xbf16>, vector<2x48xf32> -> vector<2x48xf32>
    %101 = arith.addf %100, %98 : vector<2x48xf32>
    %102 = arith.negf %101 : vector<2x48xf32>
    %103 = math.exp %102 : vector<2x48xf32>
    %cst_35 = arith.constant 1.000000e+00 : f32
    %104 = vector.broadcast %cst_35 : f32 to vector<2x48xf32>
    %105 = arith.addf %104, %103 : vector<2x48xf32>
    %106 = arith.divf %104, %105 : vector<2x48xf32>
    %107 = vector.extract_strided_slice %106 {offsets = [0, 0], sizes = [2, 24], strides = [1, 1]} : vector<2x48xf32> to vector<2x24xf32>
    %108 = vector.extract_strided_slice %106 {offsets = [0, 24], sizes = [2, 24], strides = [1, 1]} : vector<2x48xf32> to vector<2x24xf32>
    %109 = arith.subf %108, %93 : vector<2x24xf32>
    %110 = arith.mulf %107, %109 : vector<2x24xf32>
    %111 = arith.addf %93, %110 : vector<2x24xf32>
    %c6 = arith.constant 6 : index
    %c0_36 = arith.constant 0 : index
    %c0_37 = arith.constant 0 : index
    %112 = vector.load %arg1[%c6, %c0_36, %c0_37] : memref<8x2x8xbf16, #tpu.memory_space<vmem>>, vector<1x2x8xbf16>
    %113 = vector.shape_cast %112 : vector<1x2x8xbf16> to vector<2x8xbf16>
    %cst_38 = arith.constant dense<0.000000e+00> : vector<2x48xf32>
    %114 = tpu.matmul %113, %1, %cst_38 {dimension_numbers = #tpu.dot_dimension_numbers<[1], [0], [0], [1], [0, 0, 1, 1], [], []>} : vector<2x8xbf16>, vector<8x48xbf16>, vector<2x48xf32> -> vector<2x48xf32>
    %115 = vector.broadcast %2 : vector<1x48xf32> to vector<2x48xf32>
    %116 = arith.addf %114, %115 : vector<2x48xf32>
    %117 = arith.truncf %111 : vector<2x24xf32> to vector<2x24xbf16>
    %cst_39 = arith.constant dense<0.000000e+00> : vector<2x48xf32>
    %118 = tpu.matmul %117, %0, %cst_39 {dimension_numbers = #tpu.dot_dimension_numbers<[1], [0], [0], [1], [0, 0, 1, 1], [], []>} : vector<2x24xbf16>, vector<24x48xbf16>, vector<2x48xf32> -> vector<2x48xf32>
    %119 = arith.addf %118, %116 : vector<2x48xf32>
    %120 = arith.negf %119 : vector<2x48xf32>
    %121 = math.exp %120 : vector<2x48xf32>
    %cst_40 = arith.constant 1.000000e+00 : f32
    %122 = vector.broadcast %cst_40 : f32 to vector<2x48xf32>
    %123 = arith.addf %122, %121 : vector<2x48xf32>
    %124 = arith.divf %122, %123 : vector<2x48xf32>
    %125 = vector.extract_strided_slice %124 {offsets = [0, 0], sizes = [2, 24], strides = [1, 1]} : vector<2x48xf32> to vector<2x24xf32>
    %126 = vector.extract_strided_slice %124 {offsets = [0, 24], sizes = [2, 24], strides = [1, 1]} : vector<2x48xf32> to vector<2x24xf32>
    %127 = arith.subf %126, %111 : vector<2x24xf32>
    %128 = arith.mulf %125, %127 : vector<2x24xf32>
    %129 = arith.addf %111, %128 : vector<2x24xf32>
    %c7 = arith.constant 7 : index
    %c0_41 = arith.constant 0 : index
    %c0_42 = arith.constant 0 : index
    %130 = vector.load %arg1[%c7, %c0_41, %c0_42] : memref<8x2x8xbf16, #tpu.memory_space<vmem>>, vector<1x2x8xbf16>
    %131 = vector.shape_cast %130 : vector<1x2x8xbf16> to vector<2x8xbf16>
    %cst_43 = arith.constant dense<0.000000e+00> : vector<2x48xf32>
    %132 = tpu.matmul %131, %1, %cst_43 {dimension_numbers = #tpu.dot_dimension_numbers<[1], [0], [0], [1], [0, 0, 1, 1], [], []>} : vector<2x8xbf16>, vector<8x48xbf16>, vector<2x48xf32> -> vector<2x48xf32>
    %133 = vector.broadcast %2 : vector<1x48xf32> to vector<2x48xf32>
    %134 = arith.addf %132, %133 : vector<2x48xf32>
    %135 = arith.truncf %129 : vector<2x24xf32> to vector<2x24xbf16>
    %cst_44 = arith.constant dense<0.000000e+00> : vector<2x48xf32>
    %136 = tpu.matmul %135, %0, %cst_44 {dimension_numbers = #tpu.dot_dimension_numbers<[1], [0], [0], [1], [0, 0, 1, 1], [], []>} : vector<2x24xbf16>, vector<24x48xbf16>, vector<2x48xf32> -> vector<2x48xf32>
    %137 = arith.addf %136, %134 : vector<2x48xf32>
    %138 = arith.negf %137 : vector<2x48xf32>
    %139 = math.exp %138 : vector<2x48xf32>
    %cst_45 = arith.constant 1.000000e+00 : f32
    %140 = vector.broadcast %cst_45 : f32 to vector<2x48xf32>
    %141 = arith.addf %140, %139 : vector<2x48xf32>
    %142 = arith.divf %140, %141 : vector<2x48xf32>
    %143 = vector.extract_strided_slice %142 {offsets = [0, 0], sizes = [2, 24], strides = [1, 1]} : vector<2x48xf32> to vector<2x24xf32>
    %144 = vector.extract_strided_slice %142 {offsets = [0, 24], sizes = [2, 24], strides = [1, 1]} : vector<2x48xf32> to vector<2x24xf32>
    %145 = arith.subf %144, %129 : vector<2x24xf32>
    %146 = arith.mulf %143, %145 : vector<2x24xf32>
    %147 = arith.addf %129, %146 : vector<2x24xf32>
    %148 = arith.truncf %147 : vector<2x24xf32> to vector<2x24xbf16>
    %c0_46 = arith.constant 0 : index
    %c0_47 = arith.constant 0 : index
    %149 = vector.load %arg5[%c0_46, %c0_47] : memref<24x10xbf16, #tpu.memory_space<vmem>>, vector<24x10xbf16>
    %cst_48 = arith.constant dense<0.000000e+00> : vector<2x10xf32>
    %150 = tpu.matmul %148, %149, %cst_48 {dimension_numbers = #tpu.dot_dimension_numbers<[1], [0], [0], [1], [0, 0, 1, 1], [], []>} : vector<2x24xbf16>, vector<24x10xbf16>, vector<2x10xf32> -> vector<2x10xf32>
    %c0_49 = arith.constant 0 : index
    %c0_50 = arith.constant 0 : index
    %151 = vector.load %arg6[%c0_49, %c0_50] : memref<1x10xf32, #tpu.memory_space<vmem>>, vector<1x10xf32>
    %152 = vector.broadcast %151 : vector<1x10xf32> to vector<2x10xf32>
    %153 = arith.addf %150, %152 : vector<2x10xf32>
    %c0_51 = arith.constant 0 : index
    %c0_52 = arith.constant 0 : index
    %154 = vector.load %arg7[%c0_51, %c0_52] : memref<2x10xf32, #tpu.memory_space<vmem>>, vector<2x10xf32>
    tpu.vector_store %arg7[%c0_51, %c0_52], %153 {strides = array<i32>} : memref<2x10xf32, #tpu.memory_space<vmem>>, vector<2x10xf32>,
    return
  }
  func.func @transform_0(%arg0: i32) -> (i32, i32, i32) {
    %c0_i32 = arith.constant 0 : i32
    %c0_i32_0 = arith.constant 0 : i32
    %c0_i32_1 = arith.constant 0 : i32
    return %c0_i32, %arg0, %c0_i32_0 : i32, i32, i32
  }
  func.func @transform_1(%arg0: i32) -> (i32, i32) {
    %c0_i32 = arith.constant 0 : i32
    %c0_i32_0 = arith.constant 0 : i32
    %c0_i32_1 = arith.constant 0 : i32
    return %c0_i32, %c0_i32_0 : i32, i32
  }
  func.func @transform_2(%arg0: i32) -> (i32, i32) {
    %c0_i32 = arith.constant 0 : i32
    %c0_i32_0 = arith.constant 0 : i32
    %c0_i32_1 = arith.constant 0 : i32
    return %c0_i32, %c0_i32_0 : i32, i32
  }
  func.func @transform_3(%arg0: i32) -> (i32, i32) {
    %c0_i32 = arith.constant 0 : i32
    %c0_i32_0 = arith.constant 0 : i32
    %c0_i32_1 = arith.constant 0 : i32
    return %c0_i32, %c0_i32_0 : i32, i32
  }
  func.func @transform_4(%arg0: i32) -> (i32, i32) {
    %c0_i32 = arith.constant 0 : i32
    %c0_i32_0 = arith.constant 0 : i32
    %c0_i32_1 = arith.constant 0 : i32
    return %c0_i32, %c0_i32_0 : i32, i32
  }
  func.func @transform_5(%arg0: i32) -> (i32, i32) {
    %c0_i32 = arith.constant 0 : i32
    %c0_i32_0 = arith.constant 0 : i32
    %c0_i32_1 = arith.constant 0 : i32
    return %c0_i32, %c0_i32_0 : i32, i32
  }
  func.func @transform_6(%arg0: i32) -> (i32, i32) {
    %c0_i32 = arith.constant 0 : i32
    %c0_i32_0 = arith.constant 0 : i32
    return %arg0, %c0_i32 : i32, i32
  }
}

</mosaic_0001>

<llo_original>
// kernel: tpu_custom_call.1
$region0: #{tpu_custom_call.1}
  #allocation0 [shape = 'u32[]', space=smem, size = 0x4, offset = 0x4, fixed_abs, tag = 'smem constant byte address 0x4 - core index']
  #allocation1 [shape = 'u32[144,128]{1,0:T(1,128)}', space=vmem, size = 0x12000, scoped, tag = 'internal scratch']
  %s0 = inlined_call_operand.vmem [shape: bf16[8,2,8], index: 0, kind: input, shape index: {}]
  %s1 = inlined_call_operand.vmem [shape: bf16[24,48], index: 1, kind: input, shape index: {}]
  %s2 = inlined_call_operand.hbm [shape: bf16[8,48], index: 2, kind: input, shape index: {}]
  %s3 = inlined_call_operand.vmem [shape: f32[1,48], index: 3, kind: input, shape index: {}]
  %s4 = inlined_call_operand.vmem [shape: bf16[24,10], index: 4, kind: input, shape index: {}]
  %s5 = inlined_call_operand.vmem [shape: f32[1,10], index: 5, kind: input, shape index: {}]
  %s6 = inlined_call_operand.hbm [shape: f32[2,10], index: 6, kind: output, shape index: {}]
  %s7 = sld [smem:[#allocation0]]
  $region38: #{tpu_custom_call.1} parent=0
    _
  %s9 = ssub.s32 1, %s7
  %s10 = scalar_select 0, %s9, %s7
  $region1: #{tpu_custom_call.1} parent=0
    #allocation2 [shape = 'u8[2048]{0}', space=vmem, size = 0x800, scoped, tag = 'input window, operand 2, single buffered']
    #allocation3 [shape = 's32[1]{0}', space=sflag, size = 0x4, scoped, tag = 'scoped memory for tpu_custom_call.1']
    #allocation4 [shape = 's32[1]{0}', space=sflag, size = 0x4, scoped, tag = 'scoped memory for tpu_custom_call.1']
    #allocation5 [shape = 'u8[1024]{0}', space=vmem, size = 0x400, scoped, tag = 'output window, operand 0, single buffered']
    %11 = vsyncpa [#allocation3], 0
    %12 = vsyncpa [#allocation4], 0
    // Predicated region
    $region2: #{tpu_custom_call.1} parent=1 // pred_check
      _
    $region3: #{tpu_custom_call.1} parent=1 // pred_check_branch
      %14 = sbr.rel (0) target = $region5
    $region4: #{tpu_custom_call.1} parent=1 // pred_region
      _
    $region5: #{tpu_custom_call.1} parent=1 // pred_fallthru
      _
    // Predicated region
    $region6: #{tpu_custom_call.1} parent=1 // pred_check
      _
    $region7: #{tpu_custom_call.1} parent=1 // pred_check_branch
      %16 = sbr.rel (0) target = $region9
    $region8: #{tpu_custom_call.1} parent=1 // pred_region
      _
    $region9: #{tpu_custom_call.1} parent=1 // pred_fallthru
      _
    // Predicated region
    $region10: #{tpu_custom_call.1} parent=1 // pred_check
      _
    $region11: #{tpu_custom_call.1} parent=1 // pred_check_branch
      %18 = sbr.rel (0) target = $region13
    $region12: #{tpu_custom_call.1} parent=1 // pred_region
      %s20 = ssub.s32 64, 64
      %21 = vsyncadd [#allocation3], %s20
      %s23 = sshll.u32 [#allocation2], 4
      %s24 = int_to_ptr.vmem [resolvable:$true] %s23
      %26 = dma.hbm_to_vmem [thread:$0]  %s2, 64, %s24, [#allocation3]
    $region13: #{tpu_custom_call.1} parent=1 // pred_fallthru
      _
    // Predicated region
    $region14: #{tpu_custom_call.1} parent=1 // pred_check
      _
    $region15: #{tpu_custom_call.1} parent=1 // pred_check_branch
      %28 = sbr.rel (0) target = $region17
    $region16: #{tpu_custom_call.1} parent=1 // pred_region
      _
    $region17: #{tpu_custom_call.1} parent=1 // pred_fallthru
      _
    // Predicated region
    $region18: #{tpu_custom_call.1} parent=1 // pred_check
      _
    $region19: #{tpu_custom_call.1} parent=1 // pred_check_branch
      %30 = sbr.rel (0) target = $region21
    $region20: #{tpu_custom_call.1} parent=1 // pred_region
      _
    $region21: #{tpu_custom_call.1} parent=1 // pred_fallthru
      _
    // Predicated region
    $region22: #{tpu_custom_call.1} parent=1 // pred_check
      _
    $region23: #{tpu_custom_call.1} parent=1 // pred_check_branch
      %32 = sbr.rel (0) target = $region25
    $region24: #{tpu_custom_call.1} parent=1 // pred_region
      _
    $region25: #{tpu_custom_call.1} parent=1 // pred_fallthru
      _
    // Predicated region
    $region26: #{tpu_custom_call.1} parent=1 // pred_check
      _
    $region27: #{tpu_custom_call.1} parent=1 // pred_check_branch
      %34 = sbr.rel (0) target = $region29
    $region28: #{tpu_custom_call.1} parent=1 // pred_region
      %35 = dma.done [#allocation3], 64
    $region29: #{tpu_custom_call.1} parent=1 // pred_fallthru
      _
    %v37 = vld [vmem:[%s1] sm:$0xf]
    %v38 = vld [vmem:[%s1 + $0x4] sm:$0xf]
    %v39 = vld [vmem:[%s1 + $0x8] sm:$0xf]
    %v40 = vld [vmem:[#allocation2] sm:$0xf]
    %v41 = vld [vmem:[%s3] sm:$0x1]
    %v42 = vld [vmem:[%s0] sm:$0x1]
    %v44 = vlaneseq
    %v45 = vshrl.u32 %v44, 7
    %v46 = vsub.s32 0, %v45
    %v47 = vrot.slane %v41, %v46
    %vm49 = vcmask 64512
    %v51 = vsel %vm49, %v42, 0
    %vm53 = vcmask 1043456
    %v55 = vsel %vm53, %v40, 0
    %57 = vmatprep.subr.bf16.mxu0 0
    %58 = vmatpush1.bf16.msra.mxu0 0
    %59 = vmatprep.subr.bf16.mxu0 0
    %60 = vmatpush1.bf16.msra.mxu0 0
    %61 = vmatprep.subr.bf16.mxu0 0
    %62 = vmatpush1.bf16.msra.mxu0 0
    %63 = vmatprep.subr.bf16.mxu0 0
    %64 = vmatpush1.bf16.msra.mxu0 0
    %65 = vmatprep.subr.bf16.mxu0 0
    %66 = vmatpush1.bf16.msra.mxu0 0
    %67 = vmatprep.subr.bf16.mxu0 0
    %68 = vmatpush1.bf16.msra.mxu0 0
    %69 = vmatprep.subr.bf16.mxu0 0
    %70 = vmatpush1.bf16.msra.mxu0 0
    %71 = vmatprep.subr.bf16.mxu0 0
    %72 = vmatpush1.bf16.msra.mxu0 %v55
    %73 = vmatprep.subr.bf16.mxu0 0
    %74 = vmatpush2.bf16.msra.mxu0 0
    %75 = vmatprep.subr.bf16.mxu0 0
    %76 = vmatpush2.bf16.msra.mxu0 0
    %77 = vmatprep.subr.bf16.mxu0 0
    %78 = vmatpush2.bf16.msra.mxu0 0
    %79 = vmatprep.subr.bf16.mxu0 0
    %80 = vmatpush2.bf16.msra.mxu0 0
    %81 = vmatprep.subr.bf16.mxu0 0
    %82 = vmatpush2.bf16.msra.mxu0 0
    %83 = vmatprep.subr.bf16.mxu0 0
    %84 = vmatpush2.bf16.msra.mxu0 0
    %85 = vmatprep.subr.bf16.mxu0 0
    %86 = vmatpush2.bf16.msra.mxu0 0
    %87 = vmatprep.subr.bf16.mxu0 0
    %88 = vmatpush2.bf16.msra.mxu0 0
    %89 = vmatprep.mubr.bf16.mxu0 0
    %90 = vmatmul.mubr.bf16.gmra.mxu0 %v51
    %v91 = vpop.f32.mrf.mxu0
    %v92 = vadd.f32 %v47, %v91
    %v93 = vpop.f32.mrf.mxu0
    %v94 = vpop.f32.mrf.mxu0
    %v95 = vpop.f32.mrf.mxu0
    %96 = vdwg.mxu0
    %v100 = vunpack.c.l.b16 %v37
    %v101 = vunpack.c.l.b16 %v38
    %v102 = vunpack.c.l.b16 %v39
    %v103 = vpack.c.b16 %v101, %v100
    %v104 = vpack.c.b16 %v102, %v102
    %vm106 = vcmask 195584
    %v108 = vsel %vm106, 0, 0
    %v111 = vsel %vm53, %v104, 0
    %113 = vmatprep.subr.bf16.mxu0 0
    %114 = vmatpush1.bf16.msra.mxu0 0
    %115 = vmatprep.subr.bf16.mxu0 0
    %116 = vmatpush1.bf16.msra.mxu0 0
    %117 = vmatprep.subr.bf16.mxu0 0
    %118 = vmatpush1.bf16.msra.mxu0 0
    %119 = vmatprep.subr.bf16.mxu0 0
    %120 = vmatpush1.bf16.msra.mxu0 0
    %121 = vmatprep.subr.bf16.mxu0 0
    %122 = vmatpush1.bf16.msra.mxu0 0
    %123 = vmatprep.subr.bf16.mxu0 0
    %124 = vmatpush1.bf16.msra.mxu0 0
    %125 = vmatprep.subr.bf16.mxu0 0
    %126 = vmatpush1.bf16.msra.mxu0 %v111
    %127 = vmatprep.subr.bf16.mxu0 0
    %128 = vmatpush1.bf16.msra.mxu0 %v103
    %129 = vmatprep.subr.bf16.mxu0 0
    %130 = vmatpush2.bf16.msra.mxu0 0
    %131 = vmatprep.subr.bf16.mxu0 0
    %132 = vmatpush2.bf16.msra.mxu0 0
    %133 = vmatprep.subr.bf16.mxu0 0
    %134 = vmatpush2.bf16.msra.mxu0 0
    %135 = vmatprep.subr.bf16.mxu0 0
    %136 = vmatpush2.bf16.msra.mxu0 0
    %137 = vmatprep.subr.bf16.mxu0 0
    %138 = vmatpush2.bf16.msra.mxu0 0
    %139 = vmatprep.subr.bf16.mxu0 0
    %140 = vmatpush2.bf16.msra.mxu0 0
    %141 = vmatprep.subr.bf16.mxu0 0
    %142 = vmatpush2.bf16.msra.mxu0 0
    %143 = vmatprep.subr.bf16.mxu0 0
    %144 = vmatpush2.bf16.msra.mxu0 0
    %145 = vmatprep.mubr.bf16.mxu0 0
    %146 = vmatmul.mubr.bf16.gmra.mxu0 %v108
    %v147 = vpop.f32.mrf.mxu0
    %v148 = vadd.f32 %v92, %v147
    %v149 = vpop.f32.mrf.mxu0
    %v150 = vpop.f32.mrf.mxu0
    %v151 = vpop.f32.mrf.mxu0
    %152 = vdwg.mxu0
    %v153 = vxor.u32 %v148, 2147483648
    %v154 = vmul.f32 %v153, 1.442695
    %v155 = vpow.pop %v154
    %v156 = vadd.f32 %v155, 1.0
    %v157 = vrcp.pop %v156
    %v158 = vmul.f32 1.0, %v157
    %160 = vrot.lane.b32.xlu0 %v158, 104
    %v161 = vpop.permute.xlu0 %160
    %v163 = vmul.f32 %v158, %v161
    %v164 = vadd.f32 %v163, 0.0
    %s165 = scalar_lea.vmem %s0, 1
    %v166 = vld [vmem:[%s165] sm:$0x1]
    %v168 = vsel %vm49, %v166, 0
    %170 = vmatprep.subr.bf16.mxu0 0
    %171 = vmatpush1.bf16.msra.mxu0 0
    %172 = vmatprep.subr.bf16.mxu0 0
    %173 = vmatpush1.bf16.msra.mxu0 0
    %174 = vmatprep.subr.bf16.mxu0 0
    %175 = vmatpush1.bf16.msra.mxu0 0
    %176 = vmatprep.subr.bf16.mxu0 0
    %177 = vmatpush1.bf16.msra.mxu0 0
    %178 = vmatprep.subr.bf16.mxu0 0
    %179 = vmatpush1.bf16.msra.mxu0 0
    %180 = vmatprep.subr.bf16.mxu0 0
    %181 = vmatpush1.bf16.msra.mxu0 0
    %182 = vmatprep.subr.bf16.mxu0 0
    %183 = vmatpush1.bf16.msra.mxu0 0
    %184 = vmatprep.subr.bf16.mxu0 0
    %185 = vmatpush1.bf16.msra.mxu0 %v55
    %186 = vmatprep.subr.bf16.mxu0 0
    %187 = vmatpush2.bf16.msra.mxu0 0
    %188 = vmatprep.subr.bf16.mxu0 0
    %189 = vmatpush2.bf16.msra.mxu0 0
    %190 = vmatprep.subr.bf16.mxu0 0
    %191 = vmatpush2.bf16.msra.mxu0 0
    %192 = vmatprep.subr.bf16.mxu0 0
    %193 = vmatpush2.bf16.msra.mxu0 0
    %194 = vmatprep.subr.bf16.mxu0 0
    %195 = vmatpush2.bf16.msra.mxu0 0
    %196 = vmatprep.subr.bf16.mxu0 0
    %197 = vmatpush2.bf16.msra.mxu0 0
    %198 = vmatprep.subr.bf16.mxu0 0
    %199 = vmatpush2.bf16.msra.mxu0 0
    %200 = vmatprep.subr.bf16.mxu0 0
    %201 = vmatpush2.bf16.msra.mxu0 0
    %202 = vmatprep.mubr.bf16.mxu0 0
    %203 = vmatmul.mubr.bf16.gmra.mxu0 %v168
    %v204 = vpop.f32.mrf.mxu0
    %v205 = vadd.f32 %v47, %v204
    %v206 = vpop.f32.mrf.mxu0
    %v207 = vpop.f32.mrf.mxu0
    %v208 = vpop.f32.mrf.mxu0
    %209 = vdwg.mxu0
    %v210 = vpack.c.bf16 %v164, %v164
    %v212 = vsel %vm106, %v210, 0
    %214 = vmatprep.subr.bf16.mxu0 0
    %215 = vmatpush1.bf16.msra.mxu0 0
    %216 = vmatprep.subr.bf16.mxu0 0
    %217 = vmatpush1.bf16.msra.mxu0 0
    %218 = vmatprep.subr.bf16.mxu0 0
    %219 = vmatpush1.bf16.msra.mxu0 0
    %220 = vmatprep.subr.bf16.mxu0 0
    %221 = vmatpush1.bf16.msra.mxu0 0
    %222 = vmatprep.subr.bf16.mxu0 0
    %223 = vmatpush1.bf16.msra.mxu0 0
    %224 = vmatprep.subr.bf16.mxu0 0
    %225 = vmatpush1.bf16.msra.mxu0 0
    %226 = vmatprep.subr.bf16.mxu0 0
    %227 = vmatpush1.bf16.msra.mxu0 %v111
    %228 = vmatprep.subr.bf16.mxu0 0
    %229 = vmatpush1.bf16.msra.mxu0 %v103
    %230 = vmatprep.subr.bf16.mxu0 0
    %231 = vmatpush2.bf16.msra.mxu0 0
    %232 = vmatprep.subr.bf16.mxu0 0
    %233 = vmatpush2.bf16.msra.mxu0 0
    %234 = vmatprep.subr.bf16.mxu0 0
    %235 = vmatpush2.bf16.msra.mxu0 0
    %236 = vmatprep.subr.bf16.mxu0 0
    %237 = vmatpush2.bf16.msra.mxu0 0
    %238 = vmatprep.subr.bf16.mxu0 0
    %239 = vmatpush2.bf16.msra.mxu0 0
    %240 = vmatprep.subr.bf16.mxu0 0
    %241 = vmatpush2.bf16.msra.mxu0 0
    %242 = vmatprep.subr.bf16.mxu0 0
    %243 = vmatpush2.bf16.msra.mxu0 0
    %244 = vmatprep.subr.bf16.mxu0 0
    %245 = vmatpush2.bf16.msra.mxu0 0
    %246 = vmatprep.mubr.bf16.mxu0 0
    %247 = vmatmul.mubr.bf16.gmra.mxu0 %v212
    %v248 = vpop.f32.mrf.mxu0
    %v249 = vadd.f32 %v205, %v248
    %v250 = vpop.f32.mrf.mxu0
    %v251 = vpop.f32.mrf.mxu0
    %v252 = vpop.f32.mrf.mxu0
    %253 = vdwg.mxu0
    %v254 = vxor.u32 %v249, 2147483648
    %v255 = vmul.f32 %v254, 1.442695
    %v256 = vpow.pop %v255
    %v257 = vadd.f32 %v256, 1.0
    %v258 = vrcp.pop %v257
    %v259 = vmul.f32 1.0, %v258
    %261 = vrot.lane.b32.xlu0 %v164, 24
    %v262 = vpop.permute.xlu0 %261
    %v264 = vsub.f32 %v259, %v262
    %266 = vrot.lane.b32.xlu0 %v264, 104
    %v267 = vpop.permute.xlu0 %266
    %v269 = vmul.f32 %v259, %v267
    %v270 = vadd.f32 %v164, %v269
    %s271 = scalar_lea.vmem %s0, 2
    %v272 = vld [vmem:[%s271] sm:$0x1]
    %v274 = vsel %vm49, %v272, 0
    %276 = vmatprep.subr.bf16.mxu0 0
    %277 = vmatpush1.bf16.msra.mxu0 0
    %278 = vmatprep.subr.bf16.mxu0 0
    %279 = vmatpush1.bf16.msra.mxu0 0
    %280 = vmatprep.subr.bf16.mxu0 0
    %281 = vmatpush1.bf16.msra.mxu0 0
    %282 = vmatprep.subr.bf16.mxu0 0
    %283 = vmatpush1.bf16.msra.mxu0 0
    %284 = vmatprep.subr.bf16.mxu0 0
    %285 = vmatpush1.bf16.msra.mxu0 0
    %286 = vmatprep.subr.bf16.mxu0 0
    %287 = vmatpush1.bf16.msra.mxu0 0
    %288 = vmatprep.subr.bf16.mxu0 0
    %289 = vmatpush1.bf16.msra.mxu0 0
    %290 = vmatprep.subr.bf16.mxu0 0
    %291 = vmatpush1.bf16.msra.mxu0 %v55
    %292 = vmatprep.subr.bf16.mxu0 0
    %293 = vmatpush2.bf16.msra.mxu0 0
    %294 = vmatprep.subr.bf16.mxu0 0
    %295 = vmatpush2.bf16.msra.mxu0 0
    %296 = vmatprep.subr.bf16.mxu0 0
    %297 = vmatpush2.bf16.msra.mxu0 0
    %298 = vmatprep.subr.bf16.mxu0 0
    %299 = vmatpush2.bf16.msra.mxu0 0
    %300 = vmatprep.subr.bf16.mxu0 0
    %301 = vmatpush2.bf16.msra.mxu0 0
    %302 = vmatprep.subr.bf16.mxu0 0
    %303 = vmatpush2.bf16.msra.mxu0 0
    %304 = vmatprep.subr.bf16.mxu0 0
    %305 = vmatpush2.bf16.msra.mxu0 0
    %306 = vmatprep.subr.bf16.mxu0 0
    %307 = vmatpush2.bf16.msra.mxu0 0
    %308 = vmatprep.mubr.bf16.mxu0 0
    %309 = vmatmul.mubr.bf16.gmra.mxu0 %v274
    %v310 = vpop.f32.mrf.mxu0
    %v311 = vadd.f32 %v47, %v310
    %v312 = vpop.f32.mrf.mxu0
    %v313 = vpop.f32.mrf.mxu0
    %v314 = vpop.f32.mrf.mxu0
    %315 = vdwg.mxu0
    %v316 = vpack.c.bf16 %v270, %v270
    %v318 = vsel %vm106, %v316, 0
    %320 = vmatprep.subr.bf16.mxu0 0
    %321 = vmatpush1.bf16.msra.mxu0 0
    %322 = vmatprep.subr.bf16.mxu0 0
    %323 = vmatpush1.bf16.msra.mxu0 0
    %324 = vmatprep.subr.bf16.mxu0 0
    %325 = vmatpush1.bf16.msra.mxu0 0
    %326 = vmatprep.subr.bf16.mxu0 0
    %327 = vmatpush1.bf16.msra.mxu0 0
    %328 = vmatprep.subr.bf16.mxu0 0
    %329 = vmatpush1.bf16.msra.mxu0 0
    %330 = vmatprep.subr.bf16.mxu0 0
    %331 = vmatpush1.bf16.msra.mxu0 0
    %332 = vmatprep.subr.bf16.mxu0 0
    %333 = vmatpush1.bf16.msra.mxu0 %v111
    %334 = vmatprep.subr.bf16.mxu0 0
    %335 = vmatpush1.bf16.msra.mxu0 %v103
    %336 = vmatprep.subr.bf16.mxu0 0
    %337 = vmatpush2.bf16.msra.mxu0 0
    %338 = vmatprep.subr.bf16.mxu0 0
    %339 = vmatpush2.bf16.msra.mxu0 0
    %340 = vmatprep.subr.bf16.mxu0 0
    %341 = vmatpush2.bf16.msra.mxu0 0
    %342 = vmatprep.subr.bf16.mxu0 0
    %343 = vmatpush2.bf16.msra.mxu0 0
    %344 = vmatprep.subr.bf16.mxu0 0
    %345 = vmatpush2.bf16.msra.mxu0 0
    %346 = vmatprep.subr.bf16.mxu0 0
    %347 = vmatpush2.bf16.msra.mxu0 0
    %348 = vmatprep.subr.bf16.mxu0 0
    %349 = vmatpush2.bf16.msra.mxu0 0
    %350 = vmatprep.subr.bf16.mxu0 0
    %351 = vmatpush2.bf16.msra.mxu0 0
    %352 = vmatprep.mubr.bf16.mxu0 0
    %353 = vmatmul.mubr.bf16.gmra.mxu0 %v318
    %v354 = vpop.f32.mrf.mxu0
    %v355 = vadd.f32 %v311, %v354
    %v356 = vpop.f32.mrf.mxu0
    %v357 = vpop.f32.mrf.mxu0
    %v358 = vpop.f32.mrf.mxu0
    %359 = vdwg.mxu0
    %v360 = vxor.u32 %v355, 2147483648
    %v361 = vmul.f32 %v360, 1.442695
    %v362 = vpow.pop %v361
    %v363 = vadd.f32 %v362, 1.0
    %v364 = vrcp.pop %v363
    %v365 = vmul.f32 1.0, %v364
    %367 = vrot.lane.b32.xlu0 %v270, 24
    %v368 = vpop.permute.xlu0 %367
    %v370 = vsub.f32 %v365, %v368
    %372 = vrot.lane.b32.xlu0 %v370, 104
    %v373 = vpop.permute.xlu0 %372
    %v375 = vmul.f32 %v365, %v373
    %v376 = vadd.f32 %v270, %v375
    %s377 = scalar_lea.vmem %s0, 3
    %v378 = vld [vmem:[%s377] sm:$0x1]
    %v380 = vsel %vm49, %v378, 0
    %382 = vmatprep.subr.bf16.mxu0 0
    %383 = vmatpush1.bf16.msra.mxu0 0
    %384 = vmatprep.subr.bf16.mxu0 0
    %385 = vmatpush1.bf16.msra.mxu0 0
    %386 = vmatprep.subr.bf16.mxu0 0
    %387 = vmatpush1.bf16.msra.mxu0 0
    %388 = vmatprep.subr.bf16.mxu0 0
    %389 = vmatpush1.bf16.msra.mxu0 0
    %390 = vmatprep.subr.bf16.mxu0 0
    %391 = vmatpush1.bf16.msra.mxu0 0
    %392 = vmatprep.subr.bf16.mxu0 0
    %393 = vmatpush1.bf16.msra.mxu0 0
    %394 = vmatprep.subr.bf16.mxu0 0
    %395 = vmatpush1.bf16.msra.mxu0 0
    %396 = vmatprep.subr.bf16.mxu0 0
    %397 = vmatpush1.bf16.msra.mxu0 %v55
    %398 = vmatprep.subr.bf16.mxu0 0
    %399 = vmatpush2.bf16.msra.mxu0 0
    %400 = vmatprep.subr.bf16.mxu0 0
    %401 = vmatpush2.bf16.msra.mxu0 0
    %402 = vmatprep.subr.bf16.mxu0 0
    %403 = vmatpush2.bf16.msra.mxu0 0
    %404 = vmatprep.subr.bf16.mxu0 0
    %405 = vmatpush2.bf16.msra.mxu0 0
    %406 = vmatprep.subr.bf16.mxu0 0
    %407 = vmatpush2.bf16.msra.mxu0 0
    %408 = vmatprep.subr.bf16.mxu0 0
    %409 = vmatpush2.bf16.msra.mxu0 0
    %410 = vmatprep.subr.bf16.mxu0 0
    %411 = vmatpush2.bf16.msra.mxu0 0
    %412 = vmatprep.subr.bf16.mxu0 0
    %413 = vmatpush2.bf16.msra.mxu0 0
    %414 = vmatprep.mubr.bf16.mxu0 0
    %415 = vmatmul.mubr.bf16.gmra.mxu0 %v380
    %v416 = vpop.f32.mrf.mxu0
    %v417 = vadd.f32 %v47, %v416
    %v418 = vpop.f32.mrf.mxu0
    %v419 = vpop.f32.mrf.mxu0
    %v420 = vpop.f32.mrf.mxu0
    %421 = vdwg.mxu0
    %v422 = vpack.c.bf16 %v376, %v376
    %v424 = vsel %vm106, %v422, 0
    %426 = vmatprep.subr.bf16.mxu0 0
    %427 = vmatpush1.bf16.msra.mxu0 0
    %428 = vmatprep.subr.bf16.mxu0 0
    %429 = vmatpush1.bf16.msra.mxu0 0
    %430 = vmatprep.subr.bf16.mxu0 0
    %431 = vmatpush1.bf16.msra.mxu0 0
    %432 = vmatprep.subr.bf16.mxu0 0
    %433 = vmatpush1.bf16.msra.mxu0 0
    %434 = vmatprep.subr.bf16.mxu0 0
    %435 = vmatpush1.bf16.msra.mxu0 0
    %436 = vmatprep.subr.bf16.mxu0 0
    %437 = vmatpush1.bf16.msra.mxu0 0
    %438 = vmatprep.subr.bf16.mxu0 0
    %439 = vmatpush1.bf16.msra.mxu0 %v111
    %440 = vmatprep.subr.bf16.mxu0 0
    %441 = vmatpush1.bf16.msra.mxu0 %v103
    %442 = vmatprep.subr.bf16.mxu0 0
    %443 = vmatpush2.bf16.msra.mxu0 0
    %444 = vmatprep.subr.bf16.mxu0 0
    %445 = vmatpush2.bf16.msra.mxu0 0
    %446 = vmatprep.subr.bf16.mxu0 0
    %447 = vmatpush2.bf16.msra.mxu0 0
    %448 = vmatprep.subr.bf16.mxu0 0
    %449 = vmatpush2.bf16.msra.mxu0 0
    %450 = vmatprep.subr.bf16.mxu0 0
    %451 = vmatpush2.bf16.msra.mxu0 0
    %452 = vmatprep.subr.bf16.mxu0 0
    %453 = vmatpush2.bf16.msra.mxu0 0
    %454 = vmatprep.subr.bf16.mxu0 0
    %455 = vmatpush2.bf16.msra.mxu0 0
    %456 = vmatprep.subr.bf16.mxu0 0
    %457 = vmatpush2.bf16.msra.mxu0 0
    %458 = vmatprep.mubr.bf16.mxu0 0
    %459 = vmatmul.mubr.bf16.gmra.mxu0 %v424
    %v460 = vpop.f32.mrf.mxu0
    %v461 = vadd.f32 %v417, %v460
    %v462 = vpop.f32.mrf.mxu0
    %v463 = vpop.f32.mrf.mxu0
    %v464 = vpop.f32.mrf.mxu0
    %465 = vdwg.mxu0
    %v466 = vxor.u32 %v461, 2147483648
    %v467 = vmul.f32 %v466, 1.442695
    %v468 = vpow.pop %v467
    %v469 = vadd.f32 %v468, 1.0
    %v470 = vrcp.pop %v469
    %v471 = vmul.f32 1.0, %v470
    %473 = vrot.lane.b32.xlu0 %v376, 24
    %v474 = vpop.permute.xlu0 %473
    %v476 = vsub.f32 %v471, %v474
    %478 = vrot.lane.b32.xlu0 %v476, 104
    %v479 = vpop.permute.xlu0 %478
    %v481 = vmul.f32 %v471, %v479
    %v482 = vadd.f32 %v376, %v481
    %s483 = scalar_lea.vmem %s0, 4
    %v484 = vld [vmem:[%s483] sm:$0x1]
    %v486 = vsel %vm49, %v484, 0
    %488 = vmatprep.subr.bf16.mxu0 0
    %489 = vmatpush1.bf16.msra.mxu0 0
    %490 = vmatprep.subr.bf16.mxu0 0
    %491 = vmatpush1.bf16.msra.mxu0 0
    %492 = vmatprep.subr.bf16.mxu0 0
    %493 = vmatpush1.bf16.msra.mxu0 0
    %494 = vmatprep.subr.bf16.mxu0 0
    %495 = vmatpush1.bf16.msra.mxu0 0
    %496 = vmatprep.subr.bf16.mxu0 0
    %497 = vmatpush1.bf16.msra.mxu0 0
    %498 = vmatprep.subr.bf16.mxu0 0
    %499 = vmatpush1.bf16.msra.mxu0 0
    %500 = vmatprep.subr.bf16.mxu0 0
    %501 = vmatpush1.bf16.msra.mxu0 0
    %502 = vmatprep.subr.bf16.mxu0 0
    %503 = vmatpush1.bf16.msra.mxu0 %v55
    %504 = vmatprep.subr.bf16.mxu0 0
    %505 = vmatpush2.bf16.msra.mxu0 0
    %506 = vmatprep.subr.bf16.mxu0 0
    %507 = vmatpush2.bf16.msra.mxu0 0
    %508 = vmatprep.subr.bf16.mxu0 0
    %509 = vmatpush2.bf16.msra.mxu0 0
    %510 = vmatprep.subr.bf16.mxu0 0
    %511 = vmatpush2.bf16.msra.mxu0 0
    %512 = vmatprep.subr.bf16.mxu0 0
    %513 = vmatpush2.bf16.msra.mxu0 0
    %514 = vmatprep.subr.bf16.mxu0 0
    %515 = vmatpush2.bf16.msra.mxu0 0
    %516 = vmatprep.subr.bf16.mxu0 0
    %517 = vmatpush2.bf16.msra.mxu0 0
    %518 = vmatprep.subr.bf16.mxu0 0
    %519 = vmatpush2.bf16.msra.mxu0 0
    %520 = vmatprep.mubr.bf16.mxu0 0
    %521 = vmatmul.mubr.bf16.gmra.mxu0 %v486
    %v522 = vpop.f32.mrf.mxu0
    %v523 = vadd.f32 %v47, %v522
    %v524 = vpop.f32.mrf.mxu0
    %v525 = vpop.f32.mrf.mxu0
    %v526 = vpop.f32.mrf.mxu0
    %527 = vdwg.mxu0
    %v528 = vpack.c.bf16 %v482, %v482
    %v530 = vsel %vm106, %v528, 0
    %532 = vmatprep.subr.bf16.mxu0 0
    %533 = vmatpush1.bf16.msra.mxu0 0
    %534 = vmatprep.subr.bf16.mxu0 0
    %535 = vmatpush1.bf16.msra.mxu0 0
    %536 = vmatprep.subr.bf16.mxu0 0
    %537 = vmatpush1.bf16.msra.mxu0 0
    %538 = vmatprep.subr.bf16.mxu0 0
    %539 = vmatpush1.bf16.msra.mxu0 0
    %540 = vmatprep.subr.bf16.mxu0 0
    %541 = vmatpush1.bf16.msra.mxu0 0
    %542 = vmatprep.subr.bf16.mxu0 0
    %543 = vmatpush1.bf16.msra.mxu0 0
    %544 = vmatprep.subr.bf16.mxu0 0
    %545 = vmatpush1.bf16.msra.mxu0 %v111
    %546 = vmatprep.subr.bf16.mxu0 0
    %547 = vmatpush1.bf16.msra.mxu0 %v103
    %548 = vmatprep.subr.bf16.mxu0 0
    %549 = vmatpush2.bf16.msra.mxu0 0
    %550 = vmatprep.subr.bf16.mxu0 0
    %551 = vmatpush2.bf16.msra.mxu0 0
    %552 = vmatprep.subr.bf16.mxu0 0
    %553 = vmatpush2.bf16.msra.mxu0 0
    %554 = vmatprep.subr.bf16.mxu0 0
    %555 = vmatpush2.bf16.msra.mxu0 0
    %556 = vmatprep.subr.bf16.mxu0 0
    %557 = vmatpush2.bf16.msra.mxu0 0
    %558 = vmatprep.subr.bf16.mxu0 0
    %559 = vmatpush2.bf16.msra.mxu0 0
    %560 = vmatprep.subr.bf16.mxu0 0
    %561 = vmatpush2.bf16.msra.mxu0 0
    %562 = vmatprep.subr.bf16.mxu0 0
    %563 = vmatpush2.bf16.msra.mxu0 0
    %564 = vmatprep.mubr.bf16.mxu0 0
    %565 = vmatmul.mubr.bf16.gmra.mxu0 %v530
    %v566 = vpop.f32.mrf.mxu0
    %v567 = vadd.f32 %v523, %v566
    %v568 = vpop.f32.mrf.mxu0
    %v569 = vpop.f32.mrf.mxu0
    %v570 = vpop.f32.mrf.mxu0
    %571 = vdwg.mxu0
    %v572 = vxor.u32 %v567, 2147483648
    %v573 = vmul.f32 %v572, 1.442695
    %v574 = vpow.pop %v573
    %v575 = vadd.f32 %v574, 1.0
    %v576 = vrcp.pop %v575
    %v577 = vmul.f32 1.0, %v576
    %579 = vrot.lane.b32.xlu0 %v482, 24
    %v580 = vpop.permute.xlu0 %579
    %v582 = vsub.f32 %v577, %v580
    %584 = vrot.lane.b32.xlu0 %v582, 104
    %v585 = vpop.permute.xlu0 %584
    %v587 = vmul.f32 %v577, %v585
    %v588 = vadd.f32 %v482, %v587
    %s589 = scalar_lea.vmem %s0, 5
    %v590 = vld [vmem:[%s589] sm:$0x1]
    %v592 = vsel %vm49, %v590, 0
    %594 = vmatprep.subr.bf16.mxu0 0
    %595 = vmatpush1.bf16.msra.mxu0 0
    %596 = vmatprep.subr.bf16.mxu0 0
    %597 = vmatpush1.bf16.msra.mxu0 0
    %598 = vmatprep.subr.bf16.mxu0 0
    %599 = vmatpush1.bf16.msra.mxu0 0
    %600 = vmatprep.subr.bf16.mxu0 0
    %601 = vmatpush1.bf16.msra.mxu0 0
    %602 = vmatprep.subr.bf16.mxu0 0
    %603 = vmatpush1.bf16.msra.mxu0 0
    %604 = vmatprep.subr.bf16.mxu0 0
    %605 = vmatpush1.bf16.msra.mxu0 0
    %606 = vmatprep.subr.bf16.mxu0 0
    %607 = vmatpush1.bf16.msra.mxu0 0
    %608 = vmatprep.subr.bf16.mxu0 0
    %609 = vmatpush1.bf16.msra.mxu0 %v55
    %610 = vmatprep.subr.bf16.mxu0 0
    %611 = vmatpush2.bf16.msra.mxu0 0
    %612 = vmatprep.subr.bf16.mxu0 0
    %613 = vmatpush2.bf16.msra.mxu0 0
    %614 = vmatprep.subr.bf16.mxu0 0
    %615 = vmatpush2.bf16.msra.mxu0 0
    %616 = vmatprep.subr.bf16.mxu0 0
    %617 = vmatpush2.bf16.msra.mxu0 0
    %618 = vmatprep.subr.bf16.mxu0 0
    %619 = vmatpush2.bf16.msra.mxu0 0
    %620 = vmatprep.subr.bf16.mxu0 0
    %621 = vmatpush2.bf16.msra.mxu0 0
    %622 = vmatprep.subr.bf16.mxu0 0
    %623 = vmatpush2.bf16.msra.mxu0 0
    %624 = vmatprep.subr.bf16.mxu0 0
    %625 = vmatpush2.bf16.msra.mxu0 0
    %626 = vmatprep.mubr.bf16.mxu0 0
    %627 = vmatmul.mubr.bf16.gmra.mxu0 %v592
    %v628 = vpop.f32.mrf.mxu0
    %v629 = vadd.f32 %v47, %v628
    %v630 = vpop.f32.mrf.mxu0
    %v631 = vpop.f32.mrf.mxu0
    %v632 = vpop.f32.mrf.mxu0
    %633 = vdwg.mxu0
    %v634 = vpack.c.bf16 %v588, %v588
    %v636 = vsel %vm106, %v634, 0
    %638 = vmatprep.subr.bf16.mxu0 0
    %639 = vmatpush1.bf16.msra.mxu0 0
    %640 = vmatprep.subr.bf16.mxu0 0
    %641 = vmatpush1.bf16.msra.mxu0 0
    %642 = vmatprep.subr.bf16.mxu0 0
    %643 = vmatpush1.bf16.msra.mxu0 0
    %644 = vmatprep.subr.bf16.mxu0 0
    %645 = vmatpush1.bf16.msra.mxu0 0
    %646 = vmatprep.subr.bf16.mxu0 0
    %647 = vmatpush1.bf16.msra.mxu0 0
    %648 = vmatprep.subr.bf16.mxu0 0
    %649 = vmatpush1.bf16.msra.mxu0 0
    %650 = vmatprep.subr.bf16.mxu0 0
    %651 = vmatpush1.bf16.msra.mxu0 %v111
    %652 = vmatprep.subr.bf16.mxu0 0
    %653 = vmatpush1.bf16.msra.mxu0 %v103
    %654 = vmatprep.subr.bf16.mxu0 0
    %655 = vmatpush2.bf16.msra.mxu0 0
    %656 = vmatprep.subr.bf16.mxu0 0
    %657 = vmatpush2.bf16.msra.mxu0 0
    %658 = vmatprep.subr.bf16.mxu0 0
    %659 = vmatpush2.bf16.msra.mxu0 0
    %660 = vmatprep.subr.bf16.mxu0 0
    %661 = vmatpush2.bf16.msra.mxu0 0
    %662 = vmatprep.subr.bf16.mxu0 0
    %663 = vmatpush2.bf16.msra.mxu0 0
    %664 = vmatprep.subr.bf16.mxu0 0
    %665 = vmatpush2.bf16.msra.mxu0 0
    %666 = vmatprep.subr.bf16.mxu0 0
    %667 = vmatpush2.bf16.msra.mxu0 0
    %668 = vmatprep.subr.bf16.mxu0 0
    %669 = vmatpush2.bf16.msra.mxu0 0
    %670 = vmatprep.mubr.bf16.mxu0 0
    %671 = vmatmul.mubr.bf16.gmra.mxu0 %v636
    %v672 = vpop.f32.mrf.mxu0
    %v673 = vadd.f32 %v629, %v672
    %v674 = vpop.f32.mrf.mxu0
    %v675 = vpop.f32.mrf.mxu0
    %v676 = vpop.f32.mrf.mxu0
    %677 = vdwg.mxu0
    %v678 = vxor.u32 %v673, 2147483648
    %v679 = vmul.f32 %v678, 1.442695
    %v680 = vpow.pop %v679
    %v681 = vadd.f32 %v680, 1.0
    %v682 = vrcp.pop %v681
    %v683 = vmul.f32 1.0, %v682
    %685 = vrot.lane.b32.xlu0 %v588, 24
    %v686 = vpop.permute.xlu0 %685
    %v688 = vsub.f32 %v683, %v686
    %690 = vrot.lane.b32.xlu0 %v688, 104
    %v691 = vpop.permute.xlu0 %690
    %v693 = vmul.f32 %v683, %v691
    %v694 = vadd.f32 %v588, %v693
    %s695 = scalar_lea.vmem %s0, 6
    %v696 = vld [vmem:[%s695] sm:$0x1]
    %v698 = vsel %vm49, %v696, 0
    %700 = vmatprep.subr.bf16.mxu0 0
    %701 = vmatpush1.bf16.msra.mxu0 0
    %702 = vmatprep.subr.bf16.mxu0 0
    %703 = vmatpush1.bf16.msra.mxu0 0
    %704 = vmatprep.subr.bf16.mxu0 0
    %705 = vmatpush1.bf16.msra.mxu0 0
    %706 = vmatprep.subr.bf16.mxu0 0
    %707 = vmatpush1.bf16.msra.mxu0 0
    %708 = vmatprep.subr.bf16.mxu0 0
    %709 = vmatpush1.bf16.msra.mxu0 0
    %710 = vmatprep.subr.bf16.mxu0 0
    %711 = vmatpush1.bf16.msra.mxu0 0
    %712 = vmatprep.subr.bf16.mxu0 0
    %713 = vmatpush1.bf16.msra.mxu0 0
    %714 = vmatprep.subr.bf16.mxu0 0
    %715 = vmatpush1.bf16.msra.mxu0 %v55
    %716 = vmatprep.subr.bf16.mxu0 0
    %717 = vmatpush2.bf16.msra.mxu0 0
    %718 = vmatprep.subr.bf16.mxu0 0
    %719 = vmatpush2.bf16.msra.mxu0 0
    %720 = vmatprep.subr.bf16.mxu0 0
    %721 = vmatpush2.bf16.msra.mxu0 0
    %722 = vmatprep.subr.bf16.mxu0 0
    %723 = vmatpush2.bf16.msra.mxu0 0
    %724 = vmatprep.subr.bf16.mxu0 0
    %725 = vmatpush2.bf16.msra.mxu0 0
    %726 = vmatprep.subr.bf16.mxu0 0
    %727 = vmatpush2.bf16.msra.mxu0 0
    %728 = vmatprep.subr.bf16.mxu0 0
    %729 = vmatpush2.bf16.msra.mxu0 0
    %730 = vmatprep.subr.bf16.mxu0 0
    %731 = vmatpush2.bf16.msra.mxu0 0
    %732 = vmatprep.mubr.bf16.mxu0 0
    %733 = vmatmul.mubr.bf16.gmra.mxu0 %v698
    %v734 = vpop.f32.mrf.mxu0
    %v735 = vadd.f32 %v47, %v734
    %v736 = vpop.f32.mrf.mxu0
    %v737 = vpop.f32.mrf.mxu0
    %v738 = vpop.f32.mrf.mxu0
    %739 = vdwg.mxu0
    %v740 = vpack.c.bf16 %v694, %v694
    %v742 = vsel %vm106, %v740, 0
    %744 = vmatprep.subr.bf16.mxu0 0
    %745 = vmatpush1.bf16.msra.mxu0 0
    %746 = vmatprep.subr.bf16.mxu0 0
    %747 = vmatpush1.bf16.msra.mxu0 0
    %748 = vmatprep.subr.bf16.mxu0 0
    %749 = vmatpush1.bf16.msra.mxu0 0
    %750 = vmatprep.subr.bf16.mxu0 0
    %751 = vmatpush1.bf16.msra.mxu0 0
    %752 = vmatprep.subr.bf16.mxu0 0
    %753 = vmatpush1.bf16.msra.mxu0 0
    %754 = vmatprep.subr.bf16.mxu0 0
    %755 = vmatpush1.bf16.msra.mxu0 0
    %756 = vmatprep.subr.bf16.mxu0 0
    %757 = vmatpush1.bf16.msra.mxu0 %v111
    %758 = vmatprep.subr.bf16.mxu0 0
    %759 = vmatpush1.bf16.msra.mxu0 %v103
    %760 = vmatprep.subr.bf16.mxu0 0
    %761 = vmatpush2.bf16.msra.mxu0 0
    %762 = vmatprep.subr.bf16.mxu0 0
    %763 = vmatpush2.bf16.msra.mxu0 0
    %764 = vmatprep.subr.bf16.mxu0 0
    %765 = vmatpush2.bf16.msra.mxu0 0
    %766 = vmatprep.subr.bf16.mxu0 0
    %767 = vmatpush2.bf16.msra.mxu0 0
    %768 = vmatprep.subr.bf16.mxu0 0
    %769 = vmatpush2.bf16.msra.mxu0 0
    %770 = vmatprep.subr.bf16.mxu0 0
    %771 = vmatpush2.bf16.msra.mxu0 0
    %772 = vmatprep.subr.bf16.mxu0 0
    %773 = vmatpush2.bf16.msra.mxu0 0
    %774 = vmatprep.subr.bf16.mxu0 0
    %775 = vmatpush2.bf16.msra.mxu0 0
    %776 = vmatprep.mubr.bf16.mxu0 0
    %777 = vmatmul.mubr.bf16.gmra.mxu0 %v742
    %v778 = vpop.f32.mrf.mxu0
    %v779 = vadd.f32 %v735, %v778
    %v780 = vpop.f32.mrf.mxu0
    %v781 = vpop.f32.mrf.mxu0
    %v782 = vpop.f32.mrf.mxu0
    %783 = vdwg.mxu0
    %v784 = vxor.u32 %v779, 2147483648
    %v785 = vmul.f32 %v784, 1.442695
    %v786 = vpow.pop %v785
    %v787 = vadd.f32 %v786, 1.0
    %v788 = vrcp.pop %v787
    %v789 = vmul.f32 1.0, %v788
    %791 = vrot.lane.b32.xlu0 %v694, 24
    %v792 = vpop.permute.xlu0 %791
    %v794 = vsub.f32 %v789, %v792
    %796 = vrot.lane.b32.xlu0 %v794, 104
    %v797 = vpop.permute.xlu0 %796
    %v799 = vmul.f32 %v789, %v797
    %v800 = vadd.f32 %v694, %v799
    %s801 = scalar_lea.vmem %s0, 7
    %v802 = vld [vmem:[%s801] sm:$0x1]
    %v804 = vsel %vm49, %v802, 0
    %806 = vmatprep.subr.bf16.mxu0 0
    %807 = vmatpush1.bf16.msra.mxu0 0
    %808 = vmatprep.subr.bf16.mxu0 0
    %809 = vmatpush1.bf16.msra.mxu0 0
    %810 = vmatprep.subr.bf16.mxu0 0
    %811 = vmatpush1.bf16.msra.mxu0 0
    %812 = vmatprep.subr.bf16.mxu0 0
    %813 = vmatpush1.bf16.msra.mxu0 0
    %814 = vmatprep.subr.bf16.mxu0 0
    %815 = vmatpush1.bf16.msra.mxu0 0
    %816 = vmatprep.subr.bf16.mxu0 0
    %817 = vmatpush1.bf16.msra.mxu0 0
    %818 = vmatprep.subr.bf16.mxu0 0
    %819 = vmatpush1.bf16.msra.mxu0 0
    %820 = vmatprep.subr.bf16.mxu0 0
    %821 = vmatpush1.bf16.msra.mxu0 %v55
    %822 = vmatprep.subr.bf16.mxu0 0
    %823 = vmatpush2.bf16.msra.mxu0 0
    %824 = vmatprep.subr.bf16.mxu0 0
    %825 = vmatpush2.bf16.msra.mxu0 0
    %826 = vmatprep.subr.bf16.mxu0 0
    %827 = vmatpush2.bf16.msra.mxu0 0
    %828 = vmatprep.subr.bf16.mxu0 0
    %829 = vmatpush2.bf16.msra.mxu0 0
    %830 = vmatprep.subr.bf16.mxu0 0
    %831 = vmatpush2.bf16.msra.mxu0 0
    %832 = vmatprep.subr.bf16.mxu0 0
    %833 = vmatpush2.bf16.msra.mxu0 0
    %834 = vmatprep.subr.bf16.mxu0 0
    %835 = vmatpush2.bf16.msra.mxu0 0
    %836 = vmatprep.subr.bf16.mxu0 0
    %837 = vmatpush2.bf16.msra.mxu0 0
    %838 = vmatprep.mubr.bf16.mxu0 0
    %839 = vmatmul.mubr.bf16.gmra.mxu0 %v804
    %v840 = vpop.f32.mrf.mxu0
    %v841 = vadd.f32 %v47, %v840
    %v842 = vpop.f32.mrf.mxu0
    %v843 = vpop.f32.mrf.mxu0
    %v844 = vpop.f32.mrf.mxu0
    %845 = vdwg.mxu0
    %v846 = vpack.c.bf16 %v800, %v800
    %v848 = vsel %vm106, %v846, 0
    %850 = vmatprep.subr.bf16.mxu0 0
    %851 = vmatpush1.bf16.msra.mxu0 0
    %852 = vmatprep.subr.bf16.mxu0 0
    %853 = vmatpush1.bf16.msra.mxu0 0
    %854 = vmatprep.subr.bf16.mxu0 0
    %855 = vmatpush1.bf16.msra.mxu0 0
    %856 = vmatprep.subr.bf16.mxu0 0
    %857 = vmatpush1.bf16.msra.mxu0 0
    %858 = vmatprep.subr.bf16.mxu0 0
    %859 = vmatpush1.bf16.msra.mxu0 0
    %860 = vmatprep.subr.bf16.mxu0 0
    %861 = vmatpush1.bf16.msra.mxu0 0
    %862 = vmatprep.subr.bf16.mxu0 0
    %863 = vmatpush1.bf16.msra.mxu0 %v111
    %864 = vmatprep.subr.bf16.mxu0 0
    %865 = vmatpush1.bf16.msra.mxu0 %v103
    %866 = vmatprep.subr.bf16.mxu0 0
    %867 = vmatpush2.bf16.msra.mxu0 0
    %868 = vmatprep.subr.bf16.mxu0 0
    %869 = vmatpush2.bf16.msra.mxu0 0
    %870 = vmatprep.subr.bf16.mxu0 0
    %871 = vmatpush2.bf16.msra.mxu0 0
    %872 = vmatprep.subr.bf16.mxu0 0
    %873 = vmatpush2.bf16.msra.mxu0 0
    %874 = vmatprep.subr.bf16.mxu0 0
    %875 = vmatpush2.bf16.msra.mxu0 0
    %876 = vmatprep.subr.bf16.mxu0 0
    %877 = vmatpush2.bf16.msra.mxu0 0
    %878 = vmatprep.subr.bf16.mxu0 0
    %879 = vmatpush2.bf16.msra.mxu0 0
    %880 = vmatprep.subr.bf16.mxu0 0
    %881 = vmatpush2.bf16.msra.mxu0 0
    %882 = vmatprep.mubr.bf16.mxu0 0
    %883 = vmatmul.mubr.bf16.gmra.mxu0 %v848
    %v884 = vpop.f32.mrf.mxu0
    %v885 = vadd.f32 %v841, %v884
    %v886 = vpop.f32.mrf.mxu0
    %v887 = vpop.f32.mrf.mxu0
    %v888 = vpop.f32.mrf.mxu0
    %889 = vdwg.mxu0
    %v890 = vxor.u32 %v885, 2147483648
    %v891 = vmul.f32 %v890, 1.442695
    %v892 = vpow.pop %v891
    %v893 = vadd.f32 %v892, 1.0
    %v894 = vrcp.pop %v893
    %v895 = vmul.f32 1.0, %v894
    %897 = vrot.lane.b32.xlu0 %v800, 24
    %v898 = vpop.permute.xlu0 %897
    %v900 = vsub.f32 %v895, %v898
    %902 = vrot.lane.b32.xlu0 %v900, 104
    %v903 = vpop.permute.xlu0 %902
    %v905 = vmul.f32 %v895, %v903
    %v906 = vadd.f32 %v800, %v905
    %v907 = vpack.c.bf16 %v906, %v906
    %v908 = vld [vmem:[%s4] sm:$0xf]
    %v909 = vld [vmem:[%s4 + $0x4] sm:$0xf]
    %v910 = vld [vmem:[%s4 + $0x8] sm:$0xf]
    %v911 = vld [vmem:[%s5] sm:$0x1]
    %v913 = vlaneseq
    %v914 = vshrl.u32 %v913, 7
    %v915 = vsub.s32 0, %v914
    %v916 = vrot.slane %v911, %v915
    %v921 = vunpack.c.l.b16 %v908
    %v922 = vunpack.c.l.b16 %v909
    %v923 = vunpack.c.l.b16 %v910
    %v924 = vpack.c.b16 %v922, %v921
    %v925 = vpack.c.b16 %v923, %v923
    %v928 = vsel %vm106, %v907, 0
    %v931 = vsel %vm53, %v925, 0
    %933 = vmatprep.subr.bf16.mxu0 0
    %934 = vmatpush1.bf16.msra.mxu0 0
    %935 = vmatprep.subr.bf16.mxu0 0
    %936 = vmatpush1.bf16.msra.mxu0 0
    %937 = vmatprep.subr.bf16.mxu0 0
    %938 = vmatpush1.bf16.msra.mxu0 0
    %939 = vmatprep.subr.bf16.mxu0 0
    %940 = vmatpush1.bf16.msra.mxu0 0
    %941 = vmatprep.subr.bf16.mxu0 0
    %942 = vmatpush1.bf16.msra.mxu0 0
    %943 = vmatprep.subr.bf16.mxu0 0
    %944 = vmatpush1.bf16.msra.mxu0 0
    %945 = vmatprep.subr.bf16.mxu0 0
    %946 = vmatpush1.bf16.msra.mxu0 %v931
    %947 = vmatprep.subr.bf16.mxu0 0
    %948 = vmatpush1.bf16.msra.mxu0 %v924
    %949 = vmatprep.subr.bf16.mxu0 0
    %950 = vmatpush2.bf16.msra.mxu0 0
    %951 = vmatprep.subr.bf16.mxu0 0
    %952 = vmatpush2.bf16.msra.mxu0 0
    %953 = vmatprep.subr.bf16.mxu0 0
    %954 = vmatpush2.bf16.msra.mxu0 0
    %955 = vmatprep.subr.bf16.mxu0 0
    %956 = vmatpush2.bf16.msra.mxu0 0
    %957 = vmatprep.subr.bf16.mxu0 0
    %958 = vmatpush2.bf16.msra.mxu0 0
    %959 = vmatprep.subr.bf16.mxu0 0
    %960 = vmatpush2.bf16.msra.mxu0 0
    %961 = vmatprep.subr.bf16.mxu0 0
    %962 = vmatpush2.bf16.msra.mxu0 0
    %963 = vmatprep.subr.bf16.mxu0 0
    %964 = vmatpush2.bf16.msra.mxu0 0
    %965 = vmatprep.mubr.bf16.mxu0 0
    %966 = vmatmul.mubr.bf16.gmra.mxu0 %v928
    %v967 = vpop.f32.mrf.mxu0
    %v968 = vadd.f32 %v916, %v967
    %v969 = vpop.f32.mrf.mxu0
    %v970 = vpop.f32.mrf.mxu0
    %v971 = vpop.f32.mrf.mxu0
    %972 = vdwg.mxu0
    %vm973 = vcmask 74752
    %974 = vst.msk [vmem:[#allocation5] sm:$0x3] %vm973, %v968
    // Predicated region
    $region30: #{tpu_custom_call.1} parent=1 // pred_check
      _
    $region31: #{tpu_custom_call.1} parent=1 // pred_check_branch
      %976 = sbr.rel (0) target = $region33
    $region32: #{tpu_custom_call.1} parent=1 // pred_region
      %s978 = ssub.s32 32, 32
      %979 = vsyncadd [#allocation4], %s978
      %s981 = sshll.u32 [#allocation5], 4
      %s982 = int_to_ptr.vmem [resolvable:$true] %s981
      %984 = dma.vmem_to_hbm [thread:$0]  %s982, 32, %s6, [#allocation4]
    $region33: #{tpu_custom_call.1} parent=1 // pred_fallthru
      _
    // Predicated region
    $region34: #{tpu_custom_call.1} parent=1 // pred_check
      _
    $region35: #{tpu_custom_call.1} parent=1 // pred_check_branch
      %986 = sbr.rel (0) target = $region37
    $region36: #{tpu_custom_call.1} parent=1 // pred_region
      %987 = dma.done [#allocation4], 32
    $region37: #{tpu_custom_call.1} parent=1 // pred_fallthru
      _
    %988 = vsyncpa [#allocation3], 1
    %989 = vsyncpa [#allocation4], 1

</llo_original>
